<compile_context>
chip_gen: v5e
topology: v5e:2x2
jax: 0.10.0
libtpu: 0.0.40
codegen_flags: <defaults>
</compile_context>

<pallas_src>
import functools

import jax
import jax.numpy as jnp
from jax.experimental import pallas as pl
from jax.experimental.pallas import tpu as pltpu


_DEFAULT_MIN_PALLAS_BYTES = 1 << 18  # below ~256 KiB, plain XLA is faster


def _cdiv(a, b):
    return -(-a // b)


@functools.lru_cache(maxsize=1)
def _tpu_config():
    """(block_bytes, vmem_limit_bytes, tensorcores_per_chip) per generation."""
    kind = ""
    try:
        kind = jax.devices()[0].device_kind.lower()
    except Exception:  # pragma: no cover - defensive; default is safe anywhere
        pass
    if "v7" in kind or "7x" in kind:
        # 64 MiB VMEM/TC, 3.2 TB/s HBM, 2 TensorCores per chip.
        return 8 * 1024 * 1024, 48 * 1024 * 1024, 2
    if "v6" in kind:
        # 128 MiB VMEM, 1.4 TB/s HBM, 1 TensorCore.
        return 8 * 1024 * 1024, 64 * 1024 * 1024, 1
    if "v5 lite" in kind or "v5e" in kind or "v5lite" in kind:
        # 128 MiB VMEM but only 16 MiB default scoped limit (explicit limit is
        # load-bearing here), 0.82 TB/s HBM.
        return 4 * 1024 * 1024, 32 * 1024 * 1024, 1
    # Unknown / older generation: conservative middle ground (== v5e settings).
    return 4 * 1024 * 1024, 32 * 1024 * 1024, 1


def _row_hw_tiles(rows, hw, itemsize, block_bytes, cores):
    """Pick (row_tile, hw_tile) for a (rows, hw) array.

    hw (lane) tile is a multiple of 128 unless it covers the full extent; the
    row (sublane) tile is a multiple of the dtype packing (8/16/32) unless it
    covers all rows.  Block bytes stay ~<= block_bytes.  Only on
    multi-TensorCore chips is the row tile capped to keep >= 2 row tiles
    (splitting on a 1-TC chip just doubles per-step overhead).
    """
    sub = 8 * max(1, 4 // itemsize)
    # --- spatial (lane) tile ---
    if sub * hw * itemsize <= block_bytes:
        thw = hw
    else:
        thw = max(512, (block_bytes // (sub * itemsize)) // 128 * 128)
        thw = min(thw, hw)
    # --- row (sublane) tile ---
    if rows <= sub:
        tm = rows
    else:
        tm = max(sub, (block_bytes // (thw * itemsize)) // sub * sub)
        if cores >= 2:
            # Keep >= 2 row tiles so both TensorCores get work.
            tm = min(tm, max(sub, (rows // 2) // sub * sub))
        if tm >= rows:
            tm = rows
    return tm, thw


# ----------------------------------------------------------------------------
# Kernel 1a: single-stage global average pool over the lane axis of (rows, hw).
# The f32 output block is revisited across k and used as the accumulator.
# ----------------------------------------------------------------------------
def _gap_kernel(x_ref, o_ref, *, inv_hw, hw, thw):
    k = pl.program_id(1)
    nk = pl.num_programs(1)

    @pl.when(k == 0)
    def _init():
        o_ref[...] = jnp.zeros_like(o_ref)

    if hw % thw != 0:
        # Only the final HW tile is partial: mask it there (and only there) so
        # padded lanes never enter the sum.  Full tiles take the cheap path.
        @pl.when(k != nk - 1)
        def _full_tile():
            o_ref[...] += jnp.sum(x_ref[...], axis=-1, keepdims=True,
                                  dtype=jnp.float32)

        @pl.when(k == nk - 1)
        def _partial_tile():
            x = x_ref[...]
            valid = hw - k * thw
            col = jax.lax.broadcasted_iota(jnp.int32, (1, x.shape[-1]), 1)
            x = jnp.where(col < valid, x, jnp.zeros_like(x))
            o_ref[...] += jnp.sum(x, axis=-1, keepdims=True, dtype=jnp.float32)
    else:
        o_ref[...] += jnp.sum(x_ref[...], axis=-1, keepdims=True,
                              dtype=jnp.float32)

    @pl.when(k == nk - 1)
    def _finalize():
        # Multiply by a precomputed Python-constant reciprocal, not a divide.
        # (Traced after the masked accumulate above, so ordering is correct.)
        o_ref[...] = o_ref[...] * inv_hw


# ----------------------------------------------------------------------------
# Kernel 1b: two-stage GAP (multi-TensorCore path).  Each (row tile, hw tile)
# grid point writes its own lane-padded partial sum; both axes are parallel.
# ----------------------------------------------------------------------------
def _gap_partial_kernel(x_ref, o_ref, *, hw, thw):
    k = pl.program_id(1)
    nk = pl.num_programs(1)

    if hw % thw != 0:
        @pl.when(k != nk - 1)
        def _full_tile():
            s = jnp.sum(x_ref[...], axis=-1, keepdims=True, dtype=jnp.float32)
            o_ref[...] = jnp.broadcast_to(s, o_ref.shape)

        @pl.when(k == nk - 1)
        def _partial_tile():
            x = x_ref[...]
            valid = hw - k * thw
            col = jax.lax.broadcasted_iota(jnp.int32, (1, x.shape[-1]), 1)
            x = jnp.where(col < valid, x, jnp.zeros_like(x))
            s = jnp.sum(x, axis=-1, keepdims=True, dtype=jnp.float32)
            o_ref[...] = jnp.broadcast_to(s, o_ref.shape)
    else:
        s = jnp.sum(x_ref[...], axis=-1, keepdims=True, dtype=jnp.float32)
        o_ref[...] = jnp.broadcast_to(s, o_ref.shape)


def _gap_rows(x2, rows, hw, cfg):
    """x2: (rows, hw) -> (rows, 1) float32 mean over the last axis."""
    block_bytes, vmem_limit, cores = cfg
    tm, thw = _row_hw_tiles(rows, hw, x2.dtype.itemsize, block_bytes, cores)
    n_row = _cdiv(rows, tm)
    n_hw = _cdiv(hw, thw)

    if cores >= 2 and n_row < 2 and n_hw >= 2:
        # Two-stage reduction: HW tiles are independent ("parallel") so both
        # TensorCores stream HBM; the tiny finish runs in XLA.
        kernel = functools.partial(_gap_partial_kernel, hw=hw, thw=thw)
        partial = pl.pallas_call(
            kernel,
            out_shape=jax.ShapeDtypeStruct((rows, n_hw * 128), jnp.float32),
            grid_spec=pltpu.PrefetchScalarGridSpec(
                num_scalar_prefetch=0,
                grid=(n_row, n_hw),
                in_specs=[pl.BlockSpec((tm, thw), lambda i, k: (i, k))],
                out_specs=pl.BlockSpec((tm, 128), lambda i, k: (i, k)),
            ),
            compiler_params=pltpu.CompilerParams(
                dimension_semantics=("parallel", "parallel"),
                vmem_limit_bytes=vmem_limit,
            ),
        )(x2)
        partial = partial.reshape(rows, n_hw, 128)[:, :, 0]
        return jnp.sum(partial, axis=-1, keepdims=True) * (1.0 / hw)

    # Single-stage: sequential accumulation into the resident f32 output block.
    kernel = functools.partial(_gap_kernel, inv_hw=1.0 / hw, hw=hw, thw=thw)
    return pl.pallas_call(
        kernel,
        out_shape=jax.ShapeDtypeStruct((rows, 1), jnp.float32),
        grid_spec=pltpu.PrefetchScalarGridSpec(
            num_scalar_prefetch=0,
            grid=(n_row, n_hw),
            in_specs=[pl.BlockSpec((tm, thw), lambda i, k: (i, k))],
            out_specs=pl.BlockSpec((tm, 1), lambda i, k: (i, 0)),
        ),
        compiler_params=pltpu.CompilerParams(
            dimension_semantics=("parallel", "arbitrary"),
            vmem_limit_bytes=vmem_limit,
        ),
    )(x2)


# ----------------------------------------------------------------------------
# Kernel 2: nearest "interpolation" from (rows, 1) to (rows, hw) == broadcast.
# ctx is already in the output dtype, so no per-block convert here.
# ----------------------------------------------------------------------------
def _broadcast_kernel(ctx_ref, o_ref):
    o_ref[...] = jnp.broadcast_to(ctx_ref[...], o_ref.shape)


def _broadcast_rows(ctx2, rows, hw, cfg):
    """ctx2: (rows, 1) -> (rows, hw), value repeated along lanes."""
    block_bytes, vmem_limit, cores = cfg
    tm, thw = _row_hw_tiles(rows, hw, ctx2.dtype.itemsize, block_bytes, cores)
    if cores >= 2 and _cdiv(rows, tm) * _cdiv(hw, thw) < 2:
        # A single-block launch would pin this HBM-write-bound upsample to one
        # TensorCore; split the lane (HW) axis into >= 2 tiles (stores stay
        # lane-dense), or the row axis if HW is too narrow.
        if hw > 128:
            thw = min(thw, max(128, _cdiv(_cdiv(hw, 2), 128) * 128))
        elif rows > 8:
            tm = max(8, (rows // 2) // 8 * 8)
    grid = (_cdiv(rows, tm), _cdiv(hw, thw))
    return pl.pallas_call(
        _broadcast_kernel,
        out_shape=jax.ShapeDtypeStruct((rows, hw), ctx2.dtype),
        grid_spec=pltpu.PrefetchScalarGridSpec(
            num_scalar_prefetch=0,
            grid=grid,
            in_specs=[pl.BlockSpec((tm, 1), lambda i, k: (i, 0))],
            out_specs=pl.BlockSpec((tm, thw), lambda i, k: (i, k)),
        ),
        compiler_params=pltpu.CompilerParams(
            dimension_semantics=("parallel", "parallel"),
            vmem_limit_bytes=vmem_limit,
        ),
    )(ctx2)


# ----------------------------------------------------------------------------
# Python wrappers matching the PyTorch modules.
# ----------------------------------------------------------------------------
def fast_global_avg_pool_2d(x, flatten=False, *,
                            min_pallas_bytes=_DEFAULT_MIN_PALLAS_BYTES):
    """FastGlobalAvgPool2d(flatten).forward(x) for NCHW input."""
    n, c, h, w = x.shape
    hw = h * w
    if x.size * x.dtype.itemsize < min_pallas_bytes:
        # Small-input fallback: fused XLA reduction beats kernel-launch overhead.
        pooled = jnp.mean(x.reshape(n, c, hw).astype(jnp.float32),
                          axis=-1).astype(x.dtype)
    else:
        pooled = _gap_rows(x.reshape(n * c, hw), n * c, hw, _tpu_config())
        pooled = pooled.astype(x.dtype).reshape(n, c)
    if flatten:
        return pooled
    return pooled.reshape(n, c, 1, 1)


def global_context_module(x, weight, gamma, beta, running_mean, running_var, *,
                          eps=1e-5, leaky_slope=0.01,
                          min_pallas_bytes=_DEFAULT_MIN_PALLAS_BYTES):
    """GlobalContextModule.forward(x).

    weight: (Cout, Cin) 1x1-conv weight (bias=False).
    gamma/beta/running_mean/running_var: InPlaceABNSync parameters (Cout,).
    """
    n, c_in, h, w = x.shape
    c_out = weight.shape[0]
    hw = h * w
    itemsize = x.dtype.itemsize
    cfg = _tpu_config()
    # Independent gating: GAP on input bytes, upsample on output bytes.
    gap_pallas = n * c_in * hw * itemsize >= min_pallas_bytes
    bcast_pallas = n * c_out * hw * itemsize >= min_pallas_bytes

    # 1) FastGlobalAvgPool2d -> (N, Cin) in f32.
    if gap_pallas:
        pooled = _gap_rows(x.reshape(n * c_in, hw), n * c_in, hw, cfg)
        pooled = pooled.reshape(n, c_in)
    else:
        pooled = jnp.mean(x.reshape(n, c_in, hw).astype(jnp.float32), axis=-1)

    # 2) 1x1 conv (no bias) + InPlaceABNSync (folded-BN affine + leaky_relu).
    #    Tiny (N, Cout) tensor -> plain XLA (compute never binds here).
    # TODO(synk): training-mode synchronized batch statistics (dist.group.WORLD)
    # have no single-kernel equivalent; inference-mode running stats are used.
    scale = gamma.astype(jnp.float32) / jnp.sqrt(running_var.astype(jnp.float32) + eps)
    bias = beta.astype(jnp.float32) - running_mean.astype(jnp.float32) * scale
    ctx = pooled @ weight.astype(jnp.float32).T
    ctx = ctx * scale + bias
    ctx = jnp.where(ctx > 0, ctx, leaky_slope * ctx)          # (N, Cout) f32
    ctx = ctx.astype(x.dtype)  # cast once; broadcast kernel emits final dtype

    # 3) F.interpolate(..., mode='nearest') from 1x1 -> HxW == broadcast.
    if bcast_pallas:
        out = _broadcast_rows(ctx.reshape(n * c_out, 1), n * c_out, hw, cfg)
        return out.reshape(n, c_out, h, w)
    return jnp.broadcast_to(ctx[:, :, None, None], (n, c_out, h, w))


# ----------------------------------------------------------------------------
# Self-test.
# ----------------------------------------------------------------------------
if __name__ == "__main__":
    key = jax.random.PRNGKey(0)
    k1, k2, k3, k4, k5, k6, k7, k8 = jax.random.split(key, 8)

    # Small shapes consistent with the module: batch=2, Cin=4, Cout=8, spatial=16.
    n, c_in, c_out, h, w = 2, 4, 8, 16, 16
    x = jax.random.normal(k1, (n, c_in, h, w), dtype=jnp.float32)
    weight = jax.random.normal(k2, (c_out, c_in), dtype=jnp.float32) * 0.5
    gamma = 1.0 + 0.1 * jax.random.normal(k3, (c_out,), dtype=jnp.float32)
    beta = 0.1 * jax.random.normal(k4, (c_out,), dtype=jnp.float32)
    running_mean = 0.1 * jax.random.normal(k5, (c_out,), dtype=jnp.float32)
    running_var = jax.random.uniform(k6, (c_out,), dtype=jnp.float32,
                                     minval=0.5, maxval=1.5)

    # Pure-XLA reference for the full module forward.
    eps, slope = 1e-5, 0.01
    ref_pool = jnp.mean(x.reshape(n, c_in, -1), axis=-1)
    ref_ctx = ref_pool @ weight.T
    ref_ctx = (ref_ctx - running_mean) / jnp.sqrt(running_var + eps) * gamma + beta
    ref_ctx = jnp.where(ref_ctx > 0, ref_ctx, slope * ref_ctx)
    ref = jnp.broadcast_to(ref_ctx[:, :, None, None], (n, c_out, h, w))

    # Force the Pallas path at this small shape (min_pallas_bytes=0) so the
    # kernels are exercised; the default threshold routes to the XLA fallback.
    y = global_context_module(x, weight, gamma, beta, running_mean, running_var,
                              min_pallas_bytes=0)
    jax.block_until_ready(y)
    assert y.shape == (n, c_out, h, w)
    assert jnp.allclose(y, ref, atol=1e-5, rtol=1e-5), "module (pallas) mismatch"

    # Default path (small-input fallback per perf guidance) must agree as well.
    y_fb = global_context_module(x, weight, gamma, beta, running_mean, running_var)
    jax.block_until_ready(y_fb)
    assert jnp.allclose(y_fb, ref, atol=1e-5, rtol=1e-5), "module (fallback) mismatch"

    # Standalone FastGlobalAvgPool2d: flatten=False / True (Pallas path forced).
    gp = fast_global_avg_pool_2d(x, flatten=False, min_pallas_bytes=0)
    gp_flat = fast_global_avg_pool_2d(x, flatten=True, min_pallas_bytes=0)
    jax.block_until_ready((gp, gp_flat))
    assert gp.shape == (n, c_in, 1, 1) and gp_flat.shape == (n, c_in)
    assert jnp.allclose(gp.reshape(n, c_in), ref_pool, atol=1e-6, rtol=1e-6)
    assert jnp.allclose(gp_flat, ref_pool, atol=1e-6, rtol=1e-6)

    # Larger spatial size under the default (generation-tuned) config.
    xl = jax.random.normal(k7, (1, 8, 384, 384), dtype=jnp.float32)
    gl = fast_global_avg_pool_2d(xl, flatten=True)
    jax.block_until_ready(gl)
    refl = jnp.mean(xl.reshape(1, 8, -1), axis=-1)
    assert jnp.allclose(gl, refl, atol=1e-4, rtol=1e-4), "tiled GAP mismatch"

    # Forced-config tests: exercise (a) the two-stage multi-TensorCore GAP
    # path, (b) the tiled single-stage path with the pl.when-gated partial-HW
    # mask, and (c) the broadcast lane-split, regardless of the actual chip.
    xw = jax.random.normal(k8, (2, 4, 48, 40), dtype=jnp.float32)
    rows2, hw2 = 2 * 4, 48 * 40          # hw2=1920 -> tiles 1024 + 896 (partial)
    x2 = xw.reshape(rows2, hw2)
    ref2 = jnp.mean(x2.astype(jnp.float32), axis=-1, keepdims=True)
    tiny_cfg_2core = (32 * 1024, 32 * 1024 * 1024, 2)
    tiny_cfg_1core = (32 * 1024, 32 * 1024 * 1024, 1)
    got_2stage = _gap_rows(x2, rows2, hw2, tiny_cfg_2core)
    got_1stage = _gap_rows(x2, rows2, hw2, tiny_cfg_1core)
    jax.block_until_ready((got_2stage, got_1stage))
    assert jnp.allclose(got_2stage, ref2, atol=1e-5, rtol=1e-5), "2-stage GAP mismatch"
    assert jnp.allclose(got_1stage, ref2, atol=1e-5, rtol=1e-5), "tiled GAP mismatch"

    big_cfg_2core = (8 * 1024 * 1024, 48 * 1024 * 1024, 2)
    bc = _broadcast_rows(ref2.astype(jnp.float32), rows2, hw2, big_cfg_2core)
    jax.block_until_ready(bc)
    assert jnp.allclose(bc, jnp.broadcast_to(ref2, (rows2, hw2)),
                        atol=1e-6, rtol=1e-6), "split broadcast mismatch"

    print("KERNEL_OK")
</pallas_src>

<mosaic_0001>
module attributes {stable_mosaic.version = 11 : i64} {
  func.func @_gap_kernel(%arg0: i32, %arg1: i32, %arg2: memref<8x256xf32, #tpu.memory_space<vmem>>, %arg3: memref<8x1xf32, #tpu.memory_space<vmem>>) attributes {dimension_semantics = [#tpu.dimension_semantics<parallel>, #tpu.dimension_semantics<arbitrary>], iteration_bounds = array<i64: 1, 1>, scalar_prefetch = 0 : i64, scratch_operands = 0 : i64, tpu.core_type = #tpu.core_type<tc>, window_params = [{transform_indices = @transform_0, window_bounds = array<i64: 8, 256>}, {transform_indices = @transform_1, window_bounds = array<i64: 8, 1>}]} {
    %c0_i32 = arith.constant 0 : i32
    %0 = arith.cmpi eq, %arg1, %c0_i32 : i32
    %1 = arith.extui %0 : i1 to i32
    %c0_i32_0 = arith.constant 0 : i32
    %2 = arith.cmpi ne, %1, %c0_i32_0 : i32
    scf.if %2 {
      %cst_8 = arith.constant 0.000000e+00 : f32
      %12 = vector.broadcast %cst_8 : f32 to vector<8x1xf32>
      %c0_9 = arith.constant 0 : index
      %c0_10 = arith.constant 0 : index
      %13 = vector.load %arg3[%c0_9, %c0_10] : memref<8x1xf32, #tpu.memory_space<vmem>>, vector<8x1xf32>
      tpu.vector_store %arg3[%c0_9, %c0_10], %12 {strides = array<i32>} : memref<8x1xf32, #tpu.memory_space<vmem>>, vector<8x1xf32>,
    } else {
    }
    %c0 = arith.constant 0 : index
    %c0_1 = arith.constant 0 : index
    %3 = vector.load %arg3[%c0, %c0_1] : memref<8x1xf32, #tpu.memory_space<vmem>>, vector<8x1xf32>
    %c0_2 = arith.constant 0 : index
    %c0_3 = arith.constant 0 : index
    %4 = vector.load %arg2[%c0_2, %c0_3] : memref<8x256xf32, #tpu.memory_space<vmem>>, vector<8x256xf32>
    %cst = arith.constant dense<0.000000e+00> : vector<8xf32>
    %5 = vector.multi_reduction <add>, %4, %cst [1] : vector<8x256xf32> to vector<8xf32>
    %6 = vector.shape_cast %5 : vector<8xf32> to vector<8x1xf32>
    %7 = arith.addf %3, %6 : vector<8x1xf32>
    %c0_4 = arith.constant 0 : index
    %c0_5 = arith.constant 0 : index
    %8 = vector.load %arg3[%c0_4, %c0_5] : memref<8x1xf32, #tpu.memory_space<vmem>>, vector<8x1xf32>
    tpu.vector_store %arg3[%c0_4, %c0_5], %7 {strides = array<i32>} : memref<8x1xf32, #tpu.memory_space<vmem>>, vector<8x1xf32>,
    %c0_i32_6 = arith.constant 0 : i32
    %9 = arith.cmpi eq, %arg1, %c0_i32_6 : i32
    %10 = arith.extui %9 : i1 to i32
    %c0_i32_7 = arith.constant 0 : i32
    %11 = arith.cmpi ne, %10, %c0_i32_7 : i32
    scf.if %11 {
      %c0_8 = arith.constant 0 : index
      %c0_9 = arith.constant 0 : index
      %12 = vector.load %arg3[%c0_8, %c0_9] : memref<8x1xf32, #tpu.memory_space<vmem>>, vector<8x1xf32>
      %cst_10 = arith.constant 3.906250e-03 : f32
      %13 = vector.broadcast %cst_10 : f32 to vector<8x1xf32>
      %14 = arith.mulf %12, %13 : vector<8x1xf32>
      %c0_11 = arith.constant 0 : index
      %c0_12 = arith.constant 0 : index
      %15 = vector.load %arg3[%c0_11, %c0_12] : memref<8x1xf32, #tpu.memory_space<vmem>>, vector<8x1xf32>
      tpu.vector_store %arg3[%c0_11, %c0_12], %14 {strides = array<i32>} : memref<8x1xf32, #tpu.memory_space<vmem>>, vector<8x1xf32>,
    } else {
    }
    return
  }
  func.func @transform_0(%arg0: i32, %arg1: i32) -> (i32, i32) {
    %c0_i32 = arith.constant 0 : i32
    return %arg0, %arg1 : i32, i32
  }
  func.func @transform_1(%arg0: i32, %arg1: i32) -> (i32, i32) {
    %c0_i32 = arith.constant 0 : i32
    %c0_i32_0 = arith.constant 0 : i32
    return %arg0, %c0_i32 : i32, i32
  }
}

</mosaic_0001>

<llo_original>
// kernel: tpu_custom_call.1
$region0: #{tpu_custom_call.1}
  #allocation0 [shape = 'u32[]', space=smem, size = 0x4, offset = 0x4, fixed_abs, tag = 'smem constant byte address 0x4 - core index']
  #allocation1 [shape = 'u32[72,128]{1,0:T(1,128)}', space=vmem, size = 0x9000, scoped, tag = 'internal scratch']
  %s0 = inlined_call_operand.hbm [shape: f32[8,256], index: 0, kind: input, shape index: {}]
  %s1 = inlined_call_operand.vmem [shape: f32[8,1], index: 1, kind: output, shape index: {}]
  %s2 = sld [smem:[#allocation0]]
  $region26: #{tpu_custom_call.1} parent=0
    _
  %s4 = ssub.s32 1, %s2
  %s5 = scalar_select 0, %s4, %s2
  $region1: #{tpu_custom_call.1} parent=0
    #allocation2 [shape = 'u8[8192]{0}', space=vmem, size = 0x2000, scoped, tag = 'input window, operand 0, single buffered']
    #allocation3 [shape = 's32[1]{0}', space=sflag, size = 0x4, scoped, tag = 'scoped memory for tpu_custom_call.1']
    %6 = vsyncpa [#allocation3], 0
    // Predicated region
    $region2: #{tpu_custom_call.1} parent=1 // pred_check
      _
    $region3: #{tpu_custom_call.1} parent=1 // pred_check_branch
      %8 = sbr.rel (0) target = $region5
    $region4: #{tpu_custom_call.1} parent=1 // pred_region
      %10 = vsyncadd [#allocation3], 0
      %s12 = sshll.u32 %s0, 4
      %s13 = int_to_ptr.hbm [resolvable:$true] %s12
      %s14 = sshll.u32 [#allocation2], 4
      %s15 = int_to_ptr.vmem [resolvable:$true] %s14
      %17 = dma.hbm_to_vmem [thread:$0]  %s13, 256, %s15, [#allocation3]
    $region5: #{tpu_custom_call.1} parent=1 // pred_fallthru
      _
    // Predicated region
    $region6: #{tpu_custom_call.1} parent=1 // pred_check
      _
    $region7: #{tpu_custom_call.1} parent=1 // pred_check_branch
      %19 = sbr.rel (0) target = $region9
    $region8: #{tpu_custom_call.1} parent=1 // pred_region
      %21 = dma.done [#allocation3], 256
    $region9: #{tpu_custom_call.1} parent=1 // pred_fallthru
      _
    %p22 = scmp.eq.s32.totalorder 0, 0
    // Predicated region
    $region10: #{tpu_custom_call.1} parent=1 // pred_check
      %p23 = pneg %p22
    $region11: #{tpu_custom_call.1} parent=1 // pred_check_branch
      %25 = sbr.rel (%p23) target = $region13
    $region12: #{tpu_custom_call.1} parent=1 // pred_region
      %vm26 = vcmask 7168
      %27 = vst.msk [vmem:[%s1] sm:$0xff] %vm26, 0.0
    $region13: #{tpu_custom_call.1} parent=1 // pred_fallthru
      _
    %v28 = vld [vmem:[%s1] sm:$0xff]
    %v29 = vld [vmem:[#allocation2] sm:$0xff]
    %v30 = vld [vmem:[#allocation2 + $0x8] sm:$0xff]
    %v31 = vadd.f32 %v29, %v30
    %32 = vadd.xlane.f32.xlu0 %v31
    %v33 = vpop.xlane.xlu0 %32
    %v34 = vadd.f32 %v28, %v33
    %vm35 = vcmask 7168
    %36 = vst.msk [vmem:[%s1] sm:$0xff] %vm35, %v34
    // Predicated region
    $region14: #{tpu_custom_call.1} parent=1 // pred_check
      %p37 = pneg %p22
    $region15: #{tpu_custom_call.1} parent=1 // pred_check_branch
      %39 = sbr.rel (%p37) target = $region17
    $region16: #{tpu_custom_call.1} parent=1 // pred_region
      %v40 = vld [vmem:[%s1] sm:$0xff]
      %v41 = vmul.f32 %v40, 0.00390625
      %42 = vst.msk [vmem:[%s1] sm:$0xff] %vm35, %v41
    $region17: #{tpu_custom_call.1} parent=1 // pred_fallthru
      _
    // Predicated region
    $region18: #{tpu_custom_call.1} parent=1 // pred_check
      _
    $region19: #{tpu_custom_call.1} parent=1 // pred_check_branch
      %44 = sbr.rel (0) target = $region21
    $region20: #{tpu_custom_call.1} parent=1 // pred_region
      _
    $region21: #{tpu_custom_call.1} parent=1 // pred_fallthru
      _
    // Predicated region
    $region22: #{tpu_custom_call.1} parent=1 // pred_check
      _
    $region23: #{tpu_custom_call.1} parent=1 // pred_check_branch
      %46 = sbr.rel (0) target = $region25
    $region24: #{tpu_custom_call.1} parent=1 // pred_region
      _
    $region25: #{tpu_custom_call.1} parent=1 // pred_fallthru
      _
    %47 = vsyncpa [#allocation3], 1

</llo_original>
